<compile_context>
chip_gen: v6e
topology: v6e:2x2x1
jax: 0.10.0
libtpu: 0.0.40
codegen_flags: <defaults>
</compile_context>

<pallas_src>
import jax
import jax.numpy as jnp
from jax import lax
from jax.experimental import pallas as pl
from jax.experimental.pallas import tpu as pltpu

# Module hyper-parameters (the PyTorch file references module-level globals
# `state_channels` and `res_block_kernel_size`; we pick small concrete values).
STATE_CHANNELS = 4          # in/out channels of the block (residual width)
CHANNELS = 8                # hidden channels of conv1
KSIZE = 3                   # res_block_kernel_size
EPS = 1e-5                  # BatchNorm2d default eps


def _round_up(v, m):
    return (v + m - 1) // m * m


@jax.jit
def res_block_forward(x_nchw, params):
    """Forward pass of resBlock.  x_nchw: (N, Cin, H, W) float32 -> same shape."""
    n, cin, h, w = x_nchw.shape
    cmid, k = CHANNELS, KSIZE
    pad = k // 2
    hp, wp = h + 2 * pad, w + 2 * pad
    lp = hp * wp                              # padded-flat positions per image
    cnt = h * w                               # valid positions per image
    inv_total = 1.0 / (n * cnt)               # batch-norm count (batch stats)
    s_lanes = _round_up(lp, 128)              # lane-dense compute/output width
    max_shift = (k - 1) * wp + (k - 1)        # largest conv tap offset
    lx = _round_up(s_lanes + max_shift, 128)  # input lane width (tap slack)
    shifts = [dy * wp + dx for dy in range(k) for dx in range(k)]
    center = pad * wp + pad                   # tap offset that reads x itself
    rows = n * cin                            # sublane-packed input rows
    rows_mid = n * cmid                       # sublane-packed hidden rows

    # ---- host-side layout prep: pads + reshapes only (no transpose, no im2col)
    x_p = jnp.pad(x_nchw, ((0, 0), (0, 0), (pad, pad), (pad, pad)))
    x_rows = x_p.reshape(rows, lp)                           # (N*Cin, Hp*Wp)
    x_rows = jnp.pad(x_rows, ((0, 0), (0, lx - lp)))         # (N*Cin, LX)

    # block-diagonal (per-image) weights; batch is folded into the row axis so
    # each conv is a single MXU dot shared by all images.
    eye = jnp.eye(n, dtype=jnp.float32)
    # conv1 (Cmid, Cin, K, K) -> [tap, out, in]
    w1_t = jnp.transpose(params["w1"], (2, 3, 0, 1)).reshape(k * k, cmid, cin)
    # W1_bd[p*Cmid+o, t*(N*Cin)+i*Cin+c] = w1[o,c,tap t] * (i == p)
    w1_bd = jnp.einsum("toc,pi->potic", w1_t, eye).reshape(rows_mid, k * k * rows)
    # conv1x1 (Cin, Cmid, 1, 1) -> block-diagonal (N*Cin, N*Cmid)
    w2_2d = params["w2"][:, :, 0, 0]
    w2_bd = jnp.einsum("om,pi->poim", w2_2d, eye).reshape(rows, rows_mid)
    # NOTE: conv biases params["b1"] / params["b2"] are deliberately unused --
    # a per-channel constant added before a training-mode BatchNorm cancels.

    p1 = jnp.stack([params["g1"], params["be1"]], axis=1)    # (Cmid, 2)
    p2 = jnp.stack([params["g2"], params["be2"]], axis=1)    # (Cin, 2)

    # valid-position mask over the computed lanes (same for every image row)
    jj = jnp.arange(s_lanes, dtype=jnp.int32)
    mask = (((jj // wp) < h) & ((jj % wp) < w)).astype(jnp.float32)
    mask = mask.reshape(1, s_lanes)

    # ---- single fused kernel (channels+batch on sublanes, positions on lanes)
    def kernel(x_ref, mask_ref, w1_ref, w2_ref, p1_ref, p2_ref, out_ref):
        x_val = x_ref[...]                        # (rows, LX)
        msk = mask_ref[...]                       # (1, S)

        # 3x3 'same' conv: stack the 9 lane-shifted taps, one MXU dot (K=9*rows)
        taps = jnp.concatenate(
            [x_val[:, s:s + s_lanes] for s in shifts], axis=0)   # (9*rows, S)
        h1 = jnp.dot(w1_ref[...], taps,
                     preferred_element_type=jnp.float32)          # (rows_mid, S)

        def bn_scale_shift(z, nch, gb):
            """Training-mode BN over (batch rows x masked lanes) -> per-row
            fused scale/shift, tiled back to all image row-groups."""
            rs = jnp.sum(z * msk, axis=1, keepdims=True)           # (n*nch, 1)
            ch = sum(rs[i * nch:(i + 1) * nch] for i in range(n))  # (nch, 1)
            mean = ch * inv_total
            mean_f = jnp.concatenate([mean] * n, axis=0)
            d = (z - mean_f) * msk
            rs2 = jnp.sum(d * d, axis=1, keepdims=True)
            ch2 = sum(rs2[i * nch:(i + 1) * nch] for i in range(n))
            var = ch2 * inv_total                                  # biased var
            scale = gb[:, 0:1] * lax.rsqrt(var + EPS)
            shift = gb[:, 1:2] - mean * scale
            return (jnp.concatenate([scale] * n, axis=0),
                    jnp.concatenate([shift] * n, axis=0))

        s1, t1 = bn_scale_shift(h1, cmid, p1_ref[...])
        h1 = jnp.maximum(h1 * s1 + t1, 0.0)                        # bn1 + relu

        y = jnp.dot(w2_ref[...], h1,
                    preferred_element_type=jnp.float32)            # (rows, S)

        s2, t2 = bn_scale_shift(y, cin, p2_ref[...])
        y = y * s2 + t2                                            # bn2

        ident = x_val[:, center:center + s_lanes]                  # identity = x
        out_ref[...] = jnp.maximum(y + ident, 0.0) * msk           # +res, relu

    def full(shape):  # whole (small) array as one block
        return pl.BlockSpec(shape, lambda i, _s=shape: (0,) * len(_s))

    out_rows = pl.pallas_call(
        kernel,
        out_shape=jax.ShapeDtypeStruct((rows, s_lanes), jnp.float32),
        grid=(1,),
        in_specs=[full((rows, lx)),
                  full((1, s_lanes)),
                  full((rows_mid, k * k * rows)),
                  full((rows, rows_mid)),
                  full((cmid, 2)),
                  full((cin, 2))],
        out_specs=full((rows, s_lanes)),
        compiler_params=pltpu.CompilerParams(
            dimension_semantics=("arbitrary",)),
    )(x_rows, mask, w1_bd, w2_bd, p1, p2)

    # (N*Cin, S) -> NCHW: slice + reshape only, no transpose
    out = (out_rows.reshape(n, cin, s_lanes)[:, :, :lp]
           .reshape(n, cin, hp, wp)[:, :, :h, :w])
    return out


# ---------------------------------------------------------------------------
# Pure-JAX reference (faithful to the PyTorch module, including conv biases)
# ---------------------------------------------------------------------------
def _reference(x_nchw, params):
    dn = lax.conv_dimension_numbers(x_nchw.shape, params["w1"].shape,
                                    ("NCHW", "OIHW", "NCHW"))
    p = KSIZE // 2

    def bn(t, g, b):
        m = jnp.mean(t, axis=(0, 2, 3), keepdims=True)
        v = jnp.mean((t - m) ** 2, axis=(0, 2, 3), keepdims=True)
        return (t - m) * lax.rsqrt(v + EPS) * g.reshape(1, -1, 1, 1) \
               + b.reshape(1, -1, 1, 1)

    hh = lax.conv_general_dilated(x_nchw, params["w1"], (1, 1),
                                  ((p, p), (p, p)), dimension_numbers=dn)
    hh = hh + params["b1"].reshape(1, -1, 1, 1)
    hh = jnp.maximum(bn(hh, params["g1"], params["be1"]), 0.0)
    y = lax.conv_general_dilated(hh, params["w2"], (1, 1), ((0, 0), (0, 0)),
                                 dimension_numbers=dn)
    y = y + params["b2"].reshape(1, -1, 1, 1)
    y = bn(y, params["g2"], params["be2"]) + x_nchw
    return jnp.maximum(y, 0.0)


# ---------------------------------------------------------------------------
if __name__ == "__main__":
    key = jax.random.PRNGKey(0)
    ks = jax.random.split(key, 8)

    N, H, W = 2, 16, 16
    x = jax.random.normal(ks[0], (N, STATE_CHANNELS, H, W), dtype=jnp.float32)

    params = {
        # conv1: Conv2d(STATE_CHANNELS -> CHANNELS, KSIZE, padding=KSIZE//2)
        "w1": 0.1 * jax.random.normal(
            ks[1], (CHANNELS, STATE_CHANNELS, KSIZE, KSIZE), dtype=jnp.float32),
        "b1": 0.1 * jax.random.normal(ks[2], (CHANNELS,), dtype=jnp.float32),
        # bn1
        "g1": 1.0 + 0.1 * jax.random.normal(ks[3], (CHANNELS,), dtype=jnp.float32),
        "be1": 0.1 * jax.random.normal(ks[4], (CHANNELS,), dtype=jnp.float32),
        # convIdentity: Conv2d(CHANNELS -> STATE_CHANNELS, 1)
        "w2": 0.1 * jax.random.normal(
            ks[5], (STATE_CHANNELS, CHANNELS, 1, 1), dtype=jnp.float32),
        "b2": 0.1 * jax.random.normal(ks[6], (STATE_CHANNELS,), dtype=jnp.float32),
        # bn2
        "g2": jnp.ones((STATE_CHANNELS,), dtype=jnp.float32),
        "be2": 0.1 * jax.random.normal(ks[7], (STATE_CHANNELS,), dtype=jnp.float32),
    }

    out = jax.block_until_ready(res_block_forward(x, params))
    assert out.shape == x.shape and out.dtype == jnp.float32

    ref = jax.block_until_ready(_reference(x, params))
    err = float(jnp.max(jnp.abs(out - ref)))
    assert err < 1e-3, f"max abs err = {err}"

    print("KERNEL_OK")
</pallas_src>

<mosaic_0001>
module attributes {stable_mosaic.version = 11 : i64} {
  func.func @kernel(%arg0: i32, %arg1: memref<8x512xf32, #tpu.memory_space<vmem>>, %arg2: memref<1x384xf32, #tpu.memory_space<vmem>>, %arg3: memref<16x72xf32, #tpu.memory_space<vmem>>, %arg4: memref<8x16xf32, #tpu.memory_space<vmem>>, %arg5: memref<8x2xf32, #tpu.memory_space<vmem>>, %arg6: memref<4x2xf32, #tpu.memory_space<vmem>>, %arg7: memref<8x384xf32, #tpu.memory_space<vmem>>) attributes {dimension_semantics = [#tpu.dimension_semantics<arbitrary>], iteration_bounds = array<i64: 1>, scalar_prefetch = 0 : i64, scratch_operands = 0 : i64, tpu.core_type = #tpu.core_type<tc>, window_params = [{pipeline_mode = #tpu.pipeline_mode<synchronous>, transform_indices = @transform_0, window_bounds = array<i64: 8, 512>}, {pipeline_mode = #tpu.pipeline_mode<synchronous>, transform_indices = @transform_1, window_bounds = array<i64: 1, 384>}, {pipeline_mode = #tpu.pipeline_mode<synchronous>, transform_indices = @transform_2, window_bounds = array<i64: 16, 72>}, {pipeline_mode = #tpu.pipeline_mode<synchronous>, transform_indices = @transform_3, window_bounds = array<i64: 8, 16>}, {pipeline_mode = #tpu.pipeline_mode<synchronous>, transform_indices = @transform_4, window_bounds = array<i64: 8, 2>}, {pipeline_mode = #tpu.pipeline_mode<synchronous>, transform_indices = @transform_5, window_bounds = array<i64: 4, 2>}, {pipeline_mode = #tpu.pipeline_mode<synchronous>, transform_indices = @transform_6, window_bounds = array<i64: 8, 384>}]} {
    %c0 = arith.constant 0 : index
    %c0_0 = arith.constant 0 : index
    %0 = vector.load %arg1[%c0, %c0_0] : memref<8x512xf32, #tpu.memory_space<vmem>>, vector<8x512xf32>
    %c0_1 = arith.constant 0 : index
    %c0_2 = arith.constant 0 : index
    %1 = vector.load %arg2[%c0_1, %c0_2] : memref<1x384xf32, #tpu.memory_space<vmem>>, vector<1x384xf32>
    %2 = vector.extract_strided_slice %0 {offsets = [0, 0], sizes = [8, 384], strides = [1, 1]} : vector<8x512xf32> to vector<8x384xf32>
    %3 = vector.extract_strided_slice %0 {offsets = [0, 1], sizes = [8, 384], strides = [1, 1]} : vector<8x512xf32> to vector<8x384xf32>
    %4 = vector.extract_strided_slice %0 {offsets = [0, 2], sizes = [8, 384], strides = [1, 1]} : vector<8x512xf32> to vector<8x384xf32>
    %5 = vector.extract_strided_slice %0 {offsets = [0, 18], sizes = [8, 384], strides = [1, 1]} : vector<8x512xf32> to vector<8x384xf32>
    %6 = vector.extract_strided_slice %0 {offsets = [0, 19], sizes = [8, 384], strides = [1, 1]} : vector<8x512xf32> to vector<8x384xf32>
    %7 = vector.extract_strided_slice %0 {offsets = [0, 20], sizes = [8, 384], strides = [1, 1]} : vector<8x512xf32> to vector<8x384xf32>
    %8 = vector.extract_strided_slice %0 {offsets = [0, 36], sizes = [8, 384], strides = [1, 1]} : vector<8x512xf32> to vector<8x384xf32>
    %9 = vector.extract_strided_slice %0 {offsets = [0, 37], sizes = [8, 384], strides = [1, 1]} : vector<8x512xf32> to vector<8x384xf32>
    %10 = vector.extract_strided_slice %0 {offsets = [0, 38], sizes = [8, 384], strides = [1, 1]} : vector<8x512xf32> to vector<8x384xf32>
    %11 = tpu.concatenate %2, %3, %4, %5, %6, %7, %8, %9, %10 in 0 : vector<8x384xf32>, vector<8x384xf32>, vector<8x384xf32>, vector<8x384xf32>, vector<8x384xf32>, vector<8x384xf32>, vector<8x384xf32>, vector<8x384xf32>, vector<8x384xf32> -> vector<72x384xf32>
    %c0_3 = arith.constant 0 : index
    %c0_4 = arith.constant 0 : index
    %12 = vector.load %arg3[%c0_3, %c0_4] : memref<16x72xf32, #tpu.memory_space<vmem>>, vector<16x72xf32>
    %cst = arith.constant dense<0.000000e+00> : vector<16x384xf32>
    %13 = tpu.matmul %12, %11, %cst {dimension_numbers = #tpu.dot_dimension_numbers<[1], [0], [0], [1], [0, 0, 1, 1], [], []>} : vector<16x72xf32>, vector<72x384xf32>, vector<16x384xf32> -> vector<16x384xf32>
    %c0_5 = arith.constant 0 : index
    %c0_6 = arith.constant 0 : index
    %14 = vector.load %arg5[%c0_5, %c0_6] : memref<8x2xf32, #tpu.memory_space<vmem>>, vector<8x2xf32>
    %15 = vector.broadcast %1 : vector<1x384xf32> to vector<16x384xf32>
    %16 = arith.mulf %13, %15 : vector<16x384xf32>
    %cst_7 = arith.constant dense<0.000000e+00> : vector<16xf32>
    %17 = vector.multi_reduction <add>, %16, %cst_7 [1] : vector<16x384xf32> to vector<16xf32>
    %18 = vector.shape_cast %17 : vector<16xf32> to vector<16x1xf32>
    %19 = vector.extract_strided_slice %18 {offsets = [0, 0], sizes = [8, 1], strides = [1, 1]} : vector<16x1xf32> to vector<8x1xf32>
    %cst_8 = arith.constant 0.000000e+00 : f32
    %20 = vector.broadcast %cst_8 : f32 to vector<8x1xf32>
    %21 = arith.addf %20, %19 : vector<8x1xf32>
    %22 = vector.extract_strided_slice %18 {offsets = [8, 0], sizes = [8, 1], strides = [1, 1]} : vector<16x1xf32> to vector<8x1xf32>
    %23 = arith.addf %21, %22 : vector<8x1xf32>
    %cst_9 = arith.constant 0.001953125 : f32
    %24 = vector.broadcast %cst_9 : f32 to vector<8x1xf32>
    %25 = arith.mulf %23, %24 : vector<8x1xf32>
    %26 = tpu.concatenate %25, %25 in 0 : vector<8x1xf32>, vector<8x1xf32> -> vector<16x1xf32>
    %27 = vector.broadcast %26 : vector<16x1xf32> to vector<16x384xf32>
    %28 = arith.subf %13, %27 : vector<16x384xf32>
    %29 = vector.broadcast %1 : vector<1x384xf32> to vector<16x384xf32>
    %30 = arith.mulf %28, %29 : vector<16x384xf32>
    %31 = arith.mulf %30, %30 : vector<16x384xf32>
    %cst_10 = arith.constant dense<0.000000e+00> : vector<16xf32>
    %32 = vector.multi_reduction <add>, %31, %cst_10 [1] : vector<16x384xf32> to vector<16xf32>
    %33 = vector.shape_cast %32 : vector<16xf32> to vector<16x1xf32>
    %34 = vector.extract_strided_slice %33 {offsets = [0, 0], sizes = [8, 1], strides = [1, 1]} : vector<16x1xf32> to vector<8x1xf32>
    %cst_11 = arith.constant 0.000000e+00 : f32
    %35 = vector.broadcast %cst_11 : f32 to vector<8x1xf32>
    %36 = arith.addf %35, %34 : vector<8x1xf32>
    %37 = vector.extract_strided_slice %33 {offsets = [8, 0], sizes = [8, 1], strides = [1, 1]} : vector<16x1xf32> to vector<8x1xf32>
    %38 = arith.addf %36, %37 : vector<8x1xf32>
    %cst_12 = arith.constant 0.001953125 : f32
    %39 = vector.broadcast %cst_12 : f32 to vector<8x1xf32>
    %40 = arith.mulf %38, %39 : vector<8x1xf32>
    %41 = vector.extract_strided_slice %14 {offsets = [0, 0], sizes = [8, 1], strides = [1, 1]} : vector<8x2xf32> to vector<8x1xf32>
    %cst_13 = arith.constant 9.99999974E-6 : f32
    %42 = vector.broadcast %cst_13 : f32 to vector<8x1xf32>
    %43 = arith.addf %40, %42 : vector<8x1xf32>
    %44 = math.rsqrt %43 : vector<8x1xf32>
    %45 = arith.mulf %41, %44 : vector<8x1xf32>
    %46 = vector.extract_strided_slice %14 {offsets = [0, 1], sizes = [8, 1], strides = [1, 1]} : vector<8x2xf32> to vector<8x1xf32>
    %47 = arith.mulf %25, %45 : vector<8x1xf32>
    %48 = arith.subf %46, %47 : vector<8x1xf32>
    %49 = tpu.concatenate %45, %45 in 0 : vector<8x1xf32>, vector<8x1xf32> -> vector<16x1xf32>
    %50 = tpu.concatenate %48, %48 in 0 : vector<8x1xf32>, vector<8x1xf32> -> vector<16x1xf32>
    %51 = vector.broadcast %49 : vector<16x1xf32> to vector<16x384xf32>
    %52 = arith.mulf %13, %51 : vector<16x384xf32>
    %53 = vector.broadcast %50 : vector<16x1xf32> to vector<16x384xf32>
    %54 = arith.addf %52, %53 : vector<16x384xf32>
    %cst_14 = arith.constant 0.000000e+00 : f32
    %55 = vector.broadcast %cst_14 : f32 to vector<16x384xf32>
    %56 = arith.maximumf %54, %55 : vector<16x384xf32>
    %c0_15 = arith.constant 0 : index
    %c0_16 = arith.constant 0 : index
    %57 = vector.load %arg4[%c0_15, %c0_16] : memref<8x16xf32, #tpu.memory_space<vmem>>, vector<8x16xf32>
    %cst_17 = arith.constant dense<0.000000e+00> : vector<8x384xf32>
    %58 = tpu.matmul %57, %56, %cst_17 {dimension_numbers = #tpu.dot_dimension_numbers<[1], [0], [0], [1], [0, 0, 1, 1], [], []>} : vector<8x16xf32>, vector<16x384xf32>, vector<8x384xf32> -> vector<8x384xf32>
    %c0_18 = arith.constant 0 : index
    %c0_19 = arith.constant 0 : index
    %59 = vector.load %arg6[%c0_18, %c0_19] : memref<4x2xf32, #tpu.memory_space<vmem>>, vector<4x2xf32>
    %60 = vector.broadcast %1 : vector<1x384xf32> to vector<8x384xf32>
    %61 = arith.mulf %58, %60 : vector<8x384xf32>
    %cst_20 = arith.constant dense<0.000000e+00> : vector<8xf32>
    %62 = vector.multi_reduction <add>, %61, %cst_20 [1] : vector<8x384xf32> to vector<8xf32>
    %63 = vector.shape_cast %62 : vector<8xf32> to vector<8x1xf32>
    %64 = vector.extract_strided_slice %63 {offsets = [0, 0], sizes = [4, 1], strides = [1, 1]} : vector<8x1xf32> to vector<4x1xf32>
    %cst_21 = arith.constant 0.000000e+00 : f32
    %65 = vector.broadcast %cst_21 : f32 to vector<4x1xf32>
    %66 = arith.addf %65, %64 : vector<4x1xf32>
    %67 = vector.extract_strided_slice %63 {offsets = [4, 0], sizes = [4, 1], strides = [1, 1]} : vector<8x1xf32> to vector<4x1xf32>
    %68 = arith.addf %66, %67 : vector<4x1xf32>
    %cst_22 = arith.constant 0.001953125 : f32
    %69 = vector.broadcast %cst_22 : f32 to vector<4x1xf32>
    %70 = arith.mulf %68, %69 : vector<4x1xf32>
    %71 = tpu.concatenate %70, %70 in 0 : vector<4x1xf32>, vector<4x1xf32> -> vector<8x1xf32>
    %72 = vector.broadcast %71 : vector<8x1xf32> to vector<8x384xf32>
    %73 = arith.subf %58, %72 : vector<8x384xf32>
    %74 = vector.broadcast %1 : vector<1x384xf32> to vector<8x384xf32>
    %75 = arith.mulf %73, %74 : vector<8x384xf32>
    %76 = arith.mulf %75, %75 : vector<8x384xf32>
    %cst_23 = arith.constant dense<0.000000e+00> : vector<8xf32>
    %77 = vector.multi_reduction <add>, %76, %cst_23 [1] : vector<8x384xf32> to vector<8xf32>
    %78 = vector.shape_cast %77 : vector<8xf32> to vector<8x1xf32>
    %79 = vector.extract_strided_slice %78 {offsets = [0, 0], sizes = [4, 1], strides = [1, 1]} : vector<8x1xf32> to vector<4x1xf32>
    %cst_24 = arith.constant 0.000000e+00 : f32
    %80 = vector.broadcast %cst_24 : f32 to vector<4x1xf32>
    %81 = arith.addf %80, %79 : vector<4x1xf32>
    %82 = vector.extract_strided_slice %78 {offsets = [4, 0], sizes = [4, 1], strides = [1, 1]} : vector<8x1xf32> to vector<4x1xf32>
    %83 = arith.addf %81, %82 : vector<4x1xf32>
    %cst_25 = arith.constant 0.001953125 : f32
    %84 = vector.broadcast %cst_25 : f32 to vector<4x1xf32>
    %85 = arith.mulf %83, %84 : vector<4x1xf32>
    %86 = vector.extract_strided_slice %59 {offsets = [0, 0], sizes = [4, 1], strides = [1, 1]} : vector<4x2xf32> to vector<4x1xf32>
    %cst_26 = arith.constant 9.99999974E-6 : f32
    %87 = vector.broadcast %cst_26 : f32 to vector<4x1xf32>
    %88 = arith.addf %85, %87 : vector<4x1xf32>
    %89 = math.rsqrt %88 : vector<4x1xf32>
    %90 = arith.mulf %86, %89 : vector<4x1xf32>
    %91 = vector.extract_strided_slice %59 {offsets = [0, 1], sizes = [4, 1], strides = [1, 1]} : vector<4x2xf32> to vector<4x1xf32>
    %92 = arith.mulf %70, %90 : vector<4x1xf32>
    %93 = arith.subf %91, %92 : vector<4x1xf32>
    %94 = tpu.concatenate %90, %90 in 0 : vector<4x1xf32>, vector<4x1xf32> -> vector<8x1xf32>
    %95 = tpu.concatenate %93, %93 in 0 : vector<4x1xf32>, vector<4x1xf32> -> vector<8x1xf32>
    %96 = vector.broadcast %94 : vector<8x1xf32> to vector<8x384xf32>
    %97 = arith.mulf %58, %96 : vector<8x384xf32>
    %98 = vector.broadcast %95 : vector<8x1xf32> to vector<8x384xf32>
    %99 = arith.addf %97, %98 : vector<8x384xf32>
    %100 = vector.extract_strided_slice %0 {offsets = [0, 19], sizes = [8, 384], strides = [1, 1]} : vector<8x512xf32> to vector<8x384xf32>
    %101 = arith.addf %99, %100 : vector<8x384xf32>
    %cst_27 = arith.constant 0.000000e+00 : f32
    %102 = vector.broadcast %cst_27 : f32 to vector<8x384xf32>
    %103 = arith.maximumf %101, %102 : vector<8x384xf32>
    %104 = vector.broadcast %1 : vector<1x384xf32> to vector<8x384xf32>
    %105 = arith.mulf %103, %104 : vector<8x384xf32>
    %c0_28 = arith.constant 0 : index
    %c0_29 = arith.constant 0 : index
    %106 = vector.load %arg7[%c0_28, %c0_29] : memref<8x384xf32, #tpu.memory_space<vmem>>, vector<8x384xf32>
    tpu.vector_store %arg7[%c0_28, %c0_29], %105 {strides = array<i32>} : memref<8x384xf32, #tpu.memory_space<vmem>>, vector<8x384xf32>,
    return
  }
  func.func @transform_0(%arg0: i32) -> (i32, i32) {
    %c0_i32 = arith.constant 0 : i32
    %c0_i32_0 = arith.constant 0 : i32
    %c0_i32_1 = arith.constant 0 : i32
    return %c0_i32, %c0_i32_0 : i32, i32
  }
  func.func @transform_1(%arg0: i32) -> (i32, i32) {
    %c0_i32 = arith.constant 0 : i32
    %c0_i32_0 = arith.constant 0 : i32
    %c0_i32_1 = arith.constant 0 : i32
    return %c0_i32, %c0_i32_0 : i32, i32
  }
  func.func @transform_2(%arg0: i32) -> (i32, i32) {
    %c0_i32 = arith.constant 0 : i32
    %c0_i32_0 = arith.constant 0 : i32
    %c0_i32_1 = arith.constant 0 : i32
    return %c0_i32, %c0_i32_0 : i32, i32
  }
  func.func @transform_3(%arg0: i32) -> (i32, i32) {
    %c0_i32 = arith.constant 0 : i32
    %c0_i32_0 = arith.constant 0 : i32
    %c0_i32_1 = arith.constant 0 : i32
    return %c0_i32, %c0_i32_0 : i32, i32
  }
  func.func @transform_4(%arg0: i32) -> (i32, i32) {
    %c0_i32 = arith.constant 0 : i32
    %c0_i32_0 = arith.constant 0 : i32
    %c0_i32_1 = arith.constant 0 : i32
    return %c0_i32, %c0_i32_0 : i32, i32
  }
  func.func @transform_5(%arg0: i32) -> (i32, i32) {
    %c0_i32 = arith.constant 0 : i32
    %c0_i32_0 = arith.constant 0 : i32
    %c0_i32_1 = arith.constant 0 : i32
    return %c0_i32, %c0_i32_0 : i32, i32
  }
  func.func @transform_6(%arg0: i32) -> (i32, i32) {
    %c0_i32 = arith.constant 0 : i32
    %c0_i32_0 = arith.constant 0 : i32
    %c0_i32_1 = arith.constant 0 : i32
    return %c0_i32, %c0_i32_0 : i32, i32
  }
}

</mosaic_0001>

<llo_original>
// kernel: res_block_forward.1
$region0: #{res_block_forward.1}
  #allocation0 [shape = 'u32[]', space=smem, size = 0x4, offset = 0x4, fixed_abs, tag = 'smem constant byte address 0x4 - core index']
  #allocation1 [shape = 'u32[144,128]{1,0:T(1,128)}', space=vmem, size = 0x12000, scoped, tag = 'internal scratch']
  %s0 = inlined_call_operand.vmem [shape: f32[8,512], index: 0, kind: input, shape index: {}]
  %s1 = inlined_call_operand.vmem [shape: f32[1,384], index: 1, kind: input, shape index: {}]
  %s2 = inlined_call_operand.vmem [shape: f32[16,72], index: 2, kind: input, shape index: {}]
  %s3 = inlined_call_operand.vmem [shape: f32[8,16], index: 3, kind: input, shape index: {}]
  %s4 = inlined_call_operand.vmem [shape: f32[8,2], index: 4, kind: input, shape index: {}]
  %s5 = inlined_call_operand.vmem [shape: f32[4,2], index: 5, kind: input, shape index: {}]
  %s6 = inlined_call_operand.vmem [shape: f32[8,384], index: 6, kind: output, shape index: {}]
  %s7 = sld [smem:[#allocation0]]
  $region34: #{res_block_forward.1} parent=0
    _
  %s9 = ssub.s32 1, %s7
  %s10 = scalar_select 0, %s9, %s7
  // Predicated region
  $region2: #{res_block_forward.1} parent=0 // pred_check
    _
  $region3: #{res_block_forward.1} parent=0 // pred_check_branch
    %12 = sbr.rel (0) target = $region5
  $region4: #{res_block_forward.1} parent=0 // pred_region
    _
  $region5: #{res_block_forward.1} parent=0 // pred_fallthru
    _
  // Predicated region
  $region6: #{res_block_forward.1} parent=0 // pred_check
    _
  $region7: #{res_block_forward.1} parent=0 // pred_check_branch
    %14 = sbr.rel (0) target = $region9
  $region8: #{res_block_forward.1} parent=0 // pred_region
    _
  $region9: #{res_block_forward.1} parent=0 // pred_fallthru
    _
  // Predicated region
  $region10: #{res_block_forward.1} parent=0 // pred_check
    _
  $region11: #{res_block_forward.1} parent=0 // pred_check_branch
    %16 = sbr.rel (0) target = $region13
  $region12: #{res_block_forward.1} parent=0 // pred_region
    _
  $region13: #{res_block_forward.1} parent=0 // pred_fallthru
    _
  // Predicated region
  $region14: #{res_block_forward.1} parent=0 // pred_check
    _
  $region15: #{res_block_forward.1} parent=0 // pred_check_branch
    %18 = sbr.rel (0) target = $region17
  $region16: #{res_block_forward.1} parent=0 // pred_region
    _
  $region17: #{res_block_forward.1} parent=0 // pred_fallthru
    _
  // Predicated region
  $region18: #{res_block_forward.1} parent=0 // pred_check
    _
  $region19: #{res_block_forward.1} parent=0 // pred_check_branch
    %20 = sbr.rel (0) target = $region21
  $region20: #{res_block_forward.1} parent=0 // pred_region
    _
  $region21: #{res_block_forward.1} parent=0 // pred_fallthru
    _
  // Predicated region
  $region22: #{res_block_forward.1} parent=0 // pred_check
    _
  $region23: #{res_block_forward.1} parent=0 // pred_check_branch
    %22 = sbr.rel (0) target = $region25
  $region24: #{res_block_forward.1} parent=0 // pred_region
    _
  $region25: #{res_block_forward.1} parent=0 // pred_fallthru
    _
  %v23 = vld [vmem:[%s0] sm:$0xff]
  %v24 = vld [vmem:[%s0 + $0x8] sm:$0xff]
  %v25 = vld [vmem:[%s0 + $0x10] sm:$0xff]
  %v26 = vld [vmem:[%s0 + $0x18] sm:$0xff]
  %v27 = vld [vmem:[%s1] sm:$0x7]
  %32 = vrot.lane.b32.xlu0 %v23, 127
  %v33 = vpop.permute.xlu0 %32
  %34 = vrot.lane.b32.xlu0 %v24, 127
  %v35 = vpop.permute.xlu0 %34
  %36 = vrot.lane.b32.xlu0 %v25, 127
  %v37 = vpop.permute.xlu0 %36
  %38 = vrot.lane.b32.xlu0 %v26, 127
  %v39 = vpop.permute.xlu0 %38
  %vm40 = vcmask 1039360
  %v41 = vsel %vm40, %v33, %v35
  %v42 = vsel %vm40, %v35, %v37
  %v43 = vsel %vm40, %v37, %v39
  %47 = vrot.lane.b32.xlu0 %v23, 126
  %v48 = vpop.permute.xlu0 %47
  %49 = vrot.lane.b32.xlu0 %v24, 126
  %v50 = vpop.permute.xlu0 %49
  %51 = vrot.lane.b32.xlu0 %v25, 126
  %v52 = vpop.permute.xlu0 %51
  %53 = vrot.lane.b32.xlu0 %v26, 126
  %v54 = vpop.permute.xlu0 %53
  %vm55 = vcmask 1031168
  %v56 = vsel %vm55, %v48, %v50
  %v57 = vsel %vm55, %v50, %v52
  %v58 = vsel %vm55, %v52, %v54
  %62 = vrot.lane.b32.xlu0 %v23, 110
  %v63 = vpop.permute.xlu0 %62
  %64 = vrot.lane.b32.xlu0 %v24, 110
  %v65 = vpop.permute.xlu0 %64
  %66 = vrot.lane.b32.xlu0 %v25, 110
  %v67 = vpop.permute.xlu0 %66
  %68 = vrot.lane.b32.xlu0 %v26, 110
  %v69 = vpop.permute.xlu0 %68
  %vm70 = vcmask 900096
  %v71 = vsel %vm70, %v63, %v65
  %v72 = vsel %vm70, %v65, %v67
  %v73 = vsel %vm70, %v67, %v69
  %77 = vrot.lane.b32.xlu0 %v23, 109
  %v78 = vpop.permute.xlu0 %77
  %79 = vrot.lane.b32.xlu0 %v24, 109
  %v80 = vpop.permute.xlu0 %79
  %81 = vrot.lane.b32.xlu0 %v25, 109
  %v82 = vpop.permute.xlu0 %81
  %83 = vrot.lane.b32.xlu0 %v26, 109
  %v84 = vpop.permute.xlu0 %83
  %vm85 = vcmask 891904
  %v86 = vsel %vm85, %v78, %v80
  %v87 = vsel %vm85, %v80, %v82
  %v88 = vsel %vm85, %v82, %v84
  %92 = vrot.lane.b32.xlu0 %v23, 108
  %v93 = vpop.permute.xlu0 %92
  %94 = vrot.lane.b32.xlu0 %v24, 108
  %v95 = vpop.permute.xlu0 %94
  %96 = vrot.lane.b32.xlu0 %v25, 108
  %v97 = vpop.permute.xlu0 %96
  %98 = vrot.lane.b32.xlu0 %v26, 108
  %v99 = vpop.permute.xlu0 %98
  %vm100 = vcmask 883712
  %v101 = vsel %vm100, %v93, %v95
  %v102 = vsel %vm100, %v95, %v97
  %v103 = vsel %vm100, %v97, %v99
  %107 = vrot.lane.b32.xlu0 %v23, 92
  %v108 = vpop.permute.xlu0 %107
  %109 = vrot.lane.b32.xlu0 %v24, 92
  %v110 = vpop.permute.xlu0 %109
  %111 = vrot.lane.b32.xlu0 %v25, 92
  %v112 = vpop.permute.xlu0 %111
  %113 = vrot.lane.b32.xlu0 %v26, 92
  %v114 = vpop.permute.xlu0 %113
  %vm115 = vcmask 752640
  %v116 = vsel %vm115, %v108, %v110
  %v117 = vsel %vm115, %v110, %v112
  %v118 = vsel %vm115, %v112, %v114
  %122 = vrot.lane.b32.xlu0 %v23, 91
  %v123 = vpop.permute.xlu0 %122
  %124 = vrot.lane.b32.xlu0 %v24, 91
  %v125 = vpop.permute.xlu0 %124
  %126 = vrot.lane.b32.xlu0 %v25, 91
  %v127 = vpop.permute.xlu0 %126
  %128 = vrot.lane.b32.xlu0 %v26, 91
  %v129 = vpop.permute.xlu0 %128
  %vm130 = vcmask 744448
  %v131 = vsel %vm130, %v123, %v125
  %v132 = vsel %vm130, %v125, %v127
  %v133 = vsel %vm130, %v127, %v129
  %137 = vrot.lane.b32.xlu0 %v23, 90
  %v138 = vpop.permute.xlu0 %137
  %139 = vrot.lane.b32.xlu0 %v24, 90
  %v140 = vpop.permute.xlu0 %139
  %141 = vrot.lane.b32.xlu0 %v25, 90
  %v142 = vpop.permute.xlu0 %141
  %143 = vrot.lane.b32.xlu0 %v26, 90
  %v144 = vpop.permute.xlu0 %143
  %vm145 = vcmask 736256
  %v146 = vsel %vm145, %v138, %v140
  %v147 = vsel %vm145, %v140, %v142
  %v148 = vsel %vm145, %v142, %v144
  %v152 = vld [vmem:[%s2] sm:$0xff]
  %v153 = vld [vmem:[%s2 + $0x8] sm:$0xff]
  %vm154 = vcmask 588800
  %v156 = vsel %vm154, %v152, 0
  %v159 = vsel %vm154, %v153, 0
  %161 = vmatprep.subr.mxu0 0.0
  %162 = vmatpush1.msra.mxu0 0.0
  %163 = vmatprep.subr.mxu0 0.0
  %164 = vmatpush1.msra.mxu0 0.0
  %165 = vmatprep.subr.mxu0 0.0
  %166 = vmatpush1.msra.mxu0 0.0
  %167 = vmatprep.subr.mxu0 0.0
  %168 = vmatpush1.msra.mxu0 0.0
  %169 = vmatprep.subr.mxu0 0.0
  %170 = vmatpush1.msra.mxu0 0.0
  %171 = vmatprep.subr.mxu0 0.0
  %172 = vmatpush1.msra.mxu0 0.0
  %173 = vmatprep.subr.mxu0 0.0
  %174 = vmatpush1.msra.mxu0 0.0
  %175 = vmatprep.subr.mxu0 %v147
  %176 = vmatpush1.msra.mxu0 %v146
  %177 = vmatprep.subr.mxu0 %v132
  %178 = vmatpush1.msra.mxu0 %v131
  %179 = vmatprep.subr.mxu0 %v117
  %180 = vmatpush1.msra.mxu0 %v116
  %181 = vmatprep.subr.mxu0 %v102
  %182 = vmatpush1.msra.mxu0 %v101
  %183 = vmatprep.subr.mxu0 %v87
  %184 = vmatpush1.msra.mxu0 %v86
  %185 = vmatprep.subr.mxu0 %v72
  %186 = vmatpush1.msra.mxu0 %v71
  %187 = vmatprep.subr.mxu0 %v57
  %188 = vmatpush1.msra.mxu0 %v56
  %189 = vmatprep.subr.mxu0 %v42
  %190 = vmatpush1.msra.mxu0 %v41
  %191 = vmatprep.subr.mxu0 %v24
  %192 = vmatpush1.msra.mxu0 %v23
  %193 = vmatprep.subr.mxu0 0.0
  %194 = vmatpush2.msra.mxu0 0.0
  %195 = vmatprep.subr.mxu0 0.0
  %196 = vmatpush2.msra.mxu0 0.0
  %197 = vmatprep.subr.mxu0 0.0
  %198 = vmatpush2.msra.mxu0 0.0
  %199 = vmatprep.subr.mxu0 0.0
  %200 = vmatpush2.msra.mxu0 0.0
  %201 = vmatprep.subr.mxu0 0.0
  %202 = vmatpush2.msra.mxu0 0.0
  %203 = vmatprep.subr.mxu0 0.0
  %204 = vmatpush2.msra.mxu0 0.0
  %205 = vmatprep.subr.mxu0 0.0
  %206 = vmatpush2.msra.mxu0 0.0
  %207 = vmatprep.subr.mxu0 0.0
  %208 = vmatpush2.msra.mxu0 0.0
  %209 = vmatprep.subr.mxu0 0.0
  %210 = vmatpush2.msra.mxu0 0.0
  %211 = vmatprep.subr.mxu0 0.0
  %212 = vmatpush2.msra.mxu0 0.0
  %213 = vmatprep.subr.mxu0 0.0
  %214 = vmatpush2.msra.mxu0 0.0
  %215 = vmatprep.subr.mxu0 0.0
  %216 = vmatpush2.msra.mxu0 0.0
  %217 = vmatprep.subr.mxu0 0.0
  %218 = vmatpush2.msra.mxu0 0.0
  %219 = vmatprep.subr.mxu0 0.0
  %220 = vmatpush2.msra.mxu0 0.0
  %221 = vmatprep.subr.mxu0 0.0
  %222 = vmatpush2.msra.mxu0 0.0
  %223 = vmatprep.subr.mxu0 0.0
  %224 = vmatpush2.msra.mxu0 0.0
  %225 = vmatprep.mubr.f32.mxu0 0.0
  %226 = vmatmul.mubr.f32.gmra.mxu0 %v156
  %v227 = vpop.f32.mrf.mxu0
  %v228 = vadd.f32 0.0, %v227
  %v229 = vpop.f32.mrf.mxu0
  %v230 = vadd.f32 0.0, %v229
  %231 = vmatprep.mubr.f32.mxu0 0.0
  %232 = vmatmul.mubr.f32.gmra.mxu0 %v159
  %v233 = vpop.f32.mrf.mxu0
  %v234 = vadd.f32 0.0, %v233
  %v235 = vpop.f32.mrf.mxu0
  %v236 = vadd.f32 0.0, %v235
  %237 = vdwg.mxu0
  %238 = vmatprep.subr.mxu0 0.0
  %239 = vmatpush1.msra.mxu0 0.0
  %240 = vmatprep.subr.mxu0 0.0
  %241 = vmatpush1.msra.mxu0 0.0
  %242 = vmatprep.subr.mxu0 0.0
  %243 = vmatpush1.msra.mxu0 0.0
  %244 = vmatprep.subr.mxu0 0.0
  %245 = vmatpush1.msra.mxu0 0.0
  %246 = vmatprep.subr.mxu0 0.0
  %247 = vmatpush1.msra.mxu0 0.0
  %248 = vmatprep.subr.mxu0 0.0
  %249 = vmatpush1.msra.mxu0 0.0
  %250 = vmatprep.subr.mxu0 0.0
  %251 = vmatpush1.msra.mxu0 0.0
  %252 = vmatprep.subr.mxu0 0.0
  %253 = vmatpush1.msra.mxu0 %v148
  %254 = vmatprep.subr.mxu0 0.0
  %255 = vmatpush1.msra.mxu0 %v133
  %256 = vmatprep.subr.mxu0 0.0
  %257 = vmatpush1.msra.mxu0 %v118
  %258 = vmatprep.subr.mxu0 0.0
  %259 = vmatpush1.msra.mxu0 %v103
  %260 = vmatprep.subr.mxu0 0.0
  %261 = vmatpush1.msra.mxu0 %v88
  %262 = vmatprep.subr.mxu0 0.0
  %263 = vmatpush1.msra.mxu0 %v73
  %264 = vmatprep.subr.mxu0 0.0
  %265 = vmatpush1.msra.mxu0 %v58
  %266 = vmatprep.subr.mxu0 0.0
  %267 = vmatpush1.msra.mxu0 %v43
  %268 = vmatprep.subr.mxu0 0.0
  %269 = vmatpush1.msra.mxu0 %v25
  %270 = vmatprep.subr.mxu0 0.0
  %271 = vmatpush2.msra.mxu0 0.0
  %272 = vmatprep.subr.mxu0 0.0
  %273 = vmatpush2.msra.mxu0 0.0
  %274 = vmatprep.subr.mxu0 0.0
  %275 = vmatpush2.msra.mxu0 0.0
  %276 = vmatprep.subr.mxu0 0.0
  %277 = vmatpush2.msra.mxu0 0.0
  %278 = vmatprep.subr.mxu0 0.0
  %279 = vmatpush2.msra.mxu0 0.0
  %280 = vmatprep.subr.mxu0 0.0
  %281 = vmatpush2.msra.mxu0 0.0
  %282 = vmatprep.subr.mxu0 0.0
  %283 = vmatpush2.msra.mxu0 0.0
  %284 = vmatprep.subr.mxu0 0.0
  %285 = vmatpush2.msra.mxu0 0.0
  %286 = vmatprep.subr.mxu0 0.0
  %287 = vmatpush2.msra.mxu0 0.0
  %288 = vmatprep.subr.mxu0 0.0
  %289 = vmatpush2.msra.mxu0 0.0
  %290 = vmatprep.subr.mxu0 0.0
  %291 = vmatpush2.msra.mxu0 0.0
  %292 = vmatprep.subr.mxu0 0.0
  %293 = vmatpush2.msra.mxu0 0.0
  %294 = vmatprep.subr.mxu0 0.0
  %295 = vmatpush2.msra.mxu0 0.0
  %296 = vmatprep.subr.mxu0 0.0
  %297 = vmatpush2.msra.mxu0 0.0
  %298 = vmatprep.subr.mxu0 0.0
  %299 = vmatpush2.msra.mxu0 0.0
  %300 = vmatprep.subr.mxu0 0.0
  %301 = vmatpush2.msra.mxu0 0.0
  %302 = vmatprep.mubr.f32.mxu0 0.0
  %303 = vmatmul.mubr.f32.gmra.mxu0 %v156
  %v304 = vpop.f32.mrf.mxu0
  %v305 = vadd.f32 0.0, %v304
  %v306 = vpop.f32.mrf.mxu0
  %307 = vmatprep.mubr.f32.mxu0 0.0
  %308 = vmatmul.mubr.f32.gmra.mxu0 %v159
  %v309 = vpop.f32.mrf.mxu0
  %v310 = vadd.f32 0.0, %v309
  %v311 = vpop.f32.mrf.mxu0
  %312 = vdwg.mxu0
  %v313 = vld [vmem:[%s4] sm:$0xff]
  %v315 = vlaneseq
  %v316 = vshrl.u32 %v315, 7
  %v317 = vsub.s32 0, %v316
  %v318 = vrot.slane %v27, %v317
  %v319 = vlaneseq
  %v320 = vshrl.u32 %v319, 7
  %v321 = vsub.s32 1, %v320
  %v322 = vrot.slane %v27, %v321
  %v323 = vlaneseq
  %v324 = vshrl.u32 %v323, 7
  %v325 = vsub.s32 2, %v324
  %v326 = vrot.slane %v27, %v325
  %v330 = vmul.f32 %v228, %v318
  %v331 = vmul.f32 %v230, %v322
  %v332 = vmul.f32 %v305, %v326
  %v333 = vmul.f32 %v234, %v318
  %v334 = vmul.f32 %v236, %v322
  %v335 = vmul.f32 %v310, %v326
  %v336 = vadd.f32 %v330, %v331
  %v337 = vadd.f32 %v336, %v332
  %338 = vadd.xlane.f32.xlu0 %v337
  %v339 = vpop.xlane.xlu0 %338
  %v340 = vadd.f32 %v333, %v334
  %v341 = vadd.f32 %v340, %v335
  %342 = vadd.xlane.f32.xlu0 %v341
  %v343 = vpop.xlane.xlu0 %342
  %v344 = vadd.f32 %v339, 0.0
  %v345 = vadd.f32 %v344, %v343
  %v346 = vmul.f32 %v345, 0.001953125
  %348 = vset.pattern.permute.xlu0 0
  %349 = vperm.xlu0 %348, %v346
  %v350 = vpop.permute.xlu0 %349
  %v352 = vsub.f32 %v228, %v350
  %v353 = vsub.f32 %v230, %v350
  %v354 = vsub.f32 %v305, %v350
  %v355 = vsub.f32 %v234, %v350
  %v356 = vsub.f32 %v236, %v350
  %v357 = vsub.f32 %v310, %v350
  %v358 = vmul.f32 %v352, %v318
  %v359 = vmul.f32 %v353, %v322
  %v360 = vmul.f32 %v354, %v326
  %v361 = vmul.f32 %v355, %v318
  %v362 = vmul.f32 %v356, %v322
  %v363 = vmul.f32 %v357, %v326
  %v364 = vmul.f32 %v358, %v358
  %v365 = vmul.f32 %v359, %v359
  %v366 = vmul.f32 %v360, %v360
  %v367 = vmul.f32 %v361, %v361
  %v368 = vmul.f32 %v362, %v362
  %v369 = vmul.f32 %v363, %v363
  %v370 = vadd.f32 %v364, %v365
  %v371 = vadd.f32 %v370, %v366
  %372 = vadd.xlane.f32.xlu0 %v371
  %v373 = vpop.xlane.xlu0 %372
  %v374 = vadd.f32 %v367, %v368
  %v375 = vadd.f32 %v374, %v369
  %376 = vadd.xlane.f32.xlu0 %v375
  %v377 = vpop.xlane.xlu0 %376
  %v378 = vadd.f32 %v373, 0.0
  %v379 = vadd.f32 %v378, %v377
  %v380 = vmul.f32 %v379, 0.001953125
  %v381 = vadd.f32 %v380, 1e-05
  %v382 = vrsqrt.pop %v381
  %v383 = vmul.f32 %v313, %v382
  %v384 = vmul.f32 %v346, %v383
  %386 = vrot.lane.b32.xlu0 %v384, 1
  %v387 = vpop.permute.xlu0 %386
  %v389 = vsub.f32 %v313, %v387
  %391 = vset.pattern.permute.xlu0 0
  %392 = vperm.xlu0 %391, %v383
  %v393 = vpop.permute.xlu0 %392
  %v395 = vmul.f32 %v228, %v393
  %v396 = vmul.f32 %v230, %v393
  %v397 = vmul.f32 %v305, %v393
  %v398 = vmul.f32 %v234, %v393
  %v399 = vmul.f32 %v236, %v393
  %v400 = vmul.f32 %v310, %v393
  %402 = vset.pattern.permute.xlu0 1
  %403 = vperm.xlu0 %402, %v389
  %v404 = vpop.permute.xlu0 %403
  %v406 = vadd.f32 %v395, %v404
  %v407 = vadd.f32 %v396, %v404
  %v408 = vadd.f32 %v397, %v404
  %v409 = vadd.f32 %v398, %v404
  %v410 = vadd.f32 %v399, %v404
  %v411 = vadd.f32 %v400, %v404
  %v412 = vmax.f32 %v406, 0.0
  %v413 = vmax.f32 %v407, 0.0
  %v414 = vmax.f32 %v408, 0.0
  %v415 = vmax.f32 %v409, 0.0
  %v416 = vmax.f32 %v410, 0.0
  %v417 = vmax.f32 %v411, 0.0
  %v418 = vld [vmem:[%s3] sm:$0xff]
  %vm419 = vcmask 130048
  %v421 = vsel %vm419, %v418, 0
  %423 = vmatprep.subr.mxu0 0.0
  %424 = vmatpush1.msra.mxu0 0.0
  %425 = vmatprep.subr.mxu0 0.0
  %426 = vmatpush1.msra.mxu0 0.0
  %427 = vmatprep.subr.mxu0 0.0
  %428 = vmatpush1.msra.mxu0 0.0
  %429 = vmatprep.subr.mxu0 0.0
  %430 = vmatpush1.msra.mxu0 0.0
  %431 = vmatprep.subr.mxu0 0.0
  %432 = vmatpush1.msra.mxu0 0.0
  %433 = vmatprep.subr.mxu0 0.0
  %434 = vmatpush1.msra.mxu0 0.0
  %435 = vmatprep.subr.mxu0 0.0
  %436 = vmatpush1.msra.mxu0 0.0
  %437 = vmatprep.subr.mxu0 0.0
  %438 = vmatpush1.msra.mxu0 0.0
  %439 = vmatprep.subr.mxu0 0.0
  %440 = vmatpush1.msra.mxu0 0.0
  %441 = vmatprep.subr.mxu0 0.0
  %442 = vmatpush1.msra.mxu0 0.0
  %443 = vmatprep.subr.mxu0 0.0
  %444 = vmatpush1.msra.mxu0 0.0
  %445 = vmatprep.subr.mxu0 0.0
  %446 = vmatpush1.msra.mxu0 0.0
  %447 = vmatprep.subr.mxu0 0.0
  %448 = vmatpush1.msra.mxu0 0.0
  %449 = vmatprep.subr.mxu0 0.0
  %450 = vmatpush1.msra.mxu0 0.0
  %451 = vmatprep.subr.mxu0 %v416
  %452 = vmatpush1.msra.mxu0 %v415
  %453 = vmatprep.subr.mxu0 %v413
  %454 = vmatpush1.msra.mxu0 %v412
  %455 = vmatprep.subr.mxu0 0.0
  %456 = vmatpush2.msra.mxu0 0.0
  %457 = vmatprep.subr.mxu0 0.0
  %458 = vmatpush2.msra.mxu0 0.0
  %459 = vmatprep.subr.mxu0 0.0
  %460 = vmatpush2.msra.mxu0 0.0
  %461 = vmatprep.subr.mxu0 0.0
  %462 = vmatpush2.msra.mxu0 0.0
  %463 = vmatprep.subr.mxu0 0.0
  %464 = vmatpush2.msra.mxu0 0.0
  %465 = vmatprep.subr.mxu0 0.0
  %466 = vmatpush2.msra.mxu0 0.0
  %467 = vmatprep.subr.mxu0 0.0
  %468 = vmatpush2.msra.mxu0 0.0
  %469 = vmatprep.subr.mxu0 0.0
  %470 = vmatpush2.msra.mxu0 0.0
  %471 = vmatprep.subr.mxu0 0.0
  %472 = vmatpush2.msra.mxu0 0.0
  %473 = vmatprep.subr.mxu0 0.0
  %474 = vmatpush2.msra.mxu0 0.0
  %475 = vmatprep.subr.mxu0 0.0
  %476 = vmatpush2.msra.mxu0 0.0
  %477 = vmatprep.subr.mxu0 0.0
  %478 = vmatpush2.msra.mxu0 0.0
  %479 = vmatprep.subr.mxu0 0.0
  %480 = vmatpush2.msra.mxu0 0.0
  %481 = vmatprep.subr.mxu0 0.0
  %482 = vmatpush2.msra.mxu0 0.0
  %483 = vmatprep.subr.mxu0 0.0
  %484 = vmatpush2.msra.mxu0 0.0
  %485 = vmatprep.subr.mxu0 0.0
  %486 = vmatpush2.msra.mxu0 0.0
  %487 = vmatprep.mubr.f32.mxu0 0.0
  %488 = vmatmul.mubr.f32.gmra.mxu0 %v421
  %v489 = vpop.f32.mrf.mxu0
  %v490 = vadd.f32 0.0, %v489
  %v491 = vpop.f32.mrf.mxu0
  %v492 = vadd.f32 0.0, %v491
  %493 = vdwg.mxu0
  %494 = vmatprep.subr.mxu0 0.0
  %495 = vmatpush1.msra.mxu0 0.0
  %496 = vmatprep.subr.mxu0 0.0
  %497 = vmatpush1.msra.mxu0 0.0
  %498 = vmatprep.subr.mxu0 0.0
  %499 = vmatpush1.msra.mxu0 0.0
  %500 = vmatprep.subr.mxu0 0.0
  %501 = vmatpush1.msra.mxu0 0.0
  %502 = vmatprep.subr.mxu0 0.0
  %503 = vmatpush1.msra.mxu0 0.0
  %504 = vmatprep.subr.mxu0 0.0
  %505 = vmatpush1.msra.mxu0 0.0
  %506 = vmatprep.subr.mxu0 0.0
  %507 = vmatpush1.msra.mxu0 0.0
  %508 = vmatprep.subr.mxu0 0.0
  %509 = vmatpush1.msra.mxu0 0.0
  %510 = vmatprep.subr.mxu0 0.0
  %511 = vmatpush1.msra.mxu0 0.0
  %512 = vmatprep.subr.mxu0 0.0
  %513 = vmatpush1.msra.mxu0 0.0
  %514 = vmatprep.subr.mxu0 0.0
  %515 = vmatpush1.msra.mxu0 0.0
  %516 = vmatprep.subr.mxu0 0.0
  %517 = vmatpush1.msra.mxu0 0.0
  %518 = vmatprep.subr.mxu0 0.0
  %519 = vmatpush1.msra.mxu0 0.0
  %520 = vmatprep.subr.mxu0 0.0
  %521 = vmatpush1.msra.mxu0 0.0
  %522 = vmatprep.subr.mxu0 0.0
  %523 = vmatpush1.msra.mxu0 %v417
  %524 = vmatprep.subr.mxu0 0.0
  %525 = vmatpush1.msra.mxu0 %v414
  %526 = vmatprep.subr.mxu0 0.0
  %527 = vmatpush2.msra.mxu0 0.0
  %528 = vmatprep.subr.mxu0 0.0
  %529 = vmatpush2.msra.mxu0 0.0
  %530 = vmatprep.subr.mxu0 0.0
  %531 = vmatpush2.msra.mxu0 0.0
  %532 = vmatprep.subr.mxu0 0.0
  %533 = vmatpush2.msra.mxu0 0.0
  %534 = vmatprep.subr.mxu0 0.0
  %535 = vmatpush2.msra.mxu0 0.0
  %536 = vmatprep.subr.mxu0 0.0
  %537 = vmatpush2.msra.mxu0 0.0
  %538 = vmatprep.subr.mxu0 0.0
  %539 = vmatpush2.msra.mxu0 0.0
  %540 = vmatprep.subr.mxu0 0.0
  %541 = vmatpush2.msra.mxu0 0.0
  %542 = vmatprep.subr.mxu0 0.0
  %543 = vmatpush2.msra.mxu0 0.0
  %544 = vmatprep.subr.mxu0 0.0
  %545 = vmatpush2.msra.mxu0 0.0
  %546 = vmatprep.subr.mxu0 0.0
  %547 = vmatpush2.msra.mxu0 0.0
  %548 = vmatprep.subr.mxu0 0.0
  %549 = vmatpush2.msra.mxu0 0.0
  %550 = vmatprep.subr.mxu0 0.0
  %551 = vmatpush2.msra.mxu0 0.0
  %552 = vmatprep.subr.mxu0 0.0
  %553 = vmatpush2.msra.mxu0 0.0
  %554 = vmatprep.subr.mxu0 0.0
  %555 = vmatpush2.msra.mxu0 0.0
  %556 = vmatprep.subr.mxu0 0.0
  %557 = vmatpush2.msra.mxu0 0.0
  %558 = vmatprep.mubr.f32.mxu0 0.0
  %559 = vmatmul.mubr.f32.gmra.mxu0 %v421
  %v560 = vpop.f32.mrf.mxu0
  %v561 = vadd.f32 0.0, %v560
  %v562 = vpop.f32.mrf.mxu0
  %563 = vdwg.mxu0
  %v564 = vld [vmem:[%s5] sm:$0xf]
  %v565 = vmul.f32 %v490, %v318
  %v566 = vmul.f32 %v492, %v322
  %v567 = vmul.f32 %v561, %v326
  %v568 = vadd.f32 %v565, %v566
  %v569 = vadd.f32 %v568, %v567
  %570 = vadd.xlane.f32.xlu0 %v569
  %v571 = vpop.xlane.xlu0 %570
  %v572 = vadd.f32 %v571, 0.0
  %v574 = vrot.slane %v571, 4
  %v576 = vadd.f32 %v572, %v574
  %v577 = vmul.f32 %v576, 0.001953125
  %v579 = vrot.slane %v577, 4
  %vm581 = vcmask 1043456
  %v582 = vsel %vm581, %v577, %v579
  %584 = vset.pattern.permute.xlu0 0
  %585 = vperm.xlu0 %584, %v582
  %v586 = vpop.permute.xlu0 %585
  %v588 = vsub.f32 %v490, %v586
  %v589 = vsub.f32 %v492, %v586
  %v590 = vsub.f32 %v561, %v586
  %v591 = vmul.f32 %v588, %v318
  %v592 = vmul.f32 %v589, %v322
  %v593 = vmul.f32 %v590, %v326
  %v594 = vmul.f32 %v591, %v591
  %v595 = vmul.f32 %v592, %v592
  %v596 = vmul.f32 %v593, %v593
  %v597 = vadd.f32 %v594, %v595
  %v598 = vadd.f32 %v597, %v596
  %599 = vadd.xlane.f32.xlu0 %v598
  %v600 = vpop.xlane.xlu0 %599
  %v601 = vadd.f32 %v600, 0.0
  %v603 = vrot.slane %v600, 4
  %v605 = vadd.f32 %v601, %v603
  %v606 = vmul.f32 %v605, 0.001953125
  %v607 = vadd.f32 %v606, 1e-05
  %v608 = vrsqrt.pop %v607
  %v609 = vmul.f32 %v564, %v608
  %v610 = vmul.f32 %v577, %v609
  %612 = vrot.lane.b32.xlu0 %v610, 1
  %v613 = vpop.permute.xlu0 %612
  %v615 = vsub.f32 %v564, %v613
  %v617 = vrot.slane %v609, 4
  %v619 = vsel %vm581, %v609, %v617
  %v621 = vrot.slane %v615, 4
  %v623 = vsel %vm581, %v615, %v621
  %625 = vset.pattern.permute.xlu0 0
  %626 = vperm.xlu0 %625, %v619
  %v627 = vpop.permute.xlu0 %626
  %v629 = vmul.f32 %v490, %v627
  %v630 = vmul.f32 %v492, %v627
  %v631 = vmul.f32 %v561, %v627
  %633 = vset.pattern.permute.xlu0 1
  %634 = vperm.xlu0 %633, %v623
  %v635 = vpop.permute.xlu0 %634
  %v637 = vadd.f32 %v629, %v635
  %v638 = vadd.f32 %v630, %v635
  %v639 = vadd.f32 %v631, %v635
  %v640 = vadd.f32 %v637, %v86
  %v641 = vadd.f32 %v638, %v87
  %v642 = vadd.f32 %v639, %v88
  %v643 = vmax.f32 %v640, 0.0
  %v644 = vmax.f32 %v641, 0.0
  %v645 = vmax.f32 %v642, 0.0
  %v646 = vmul.f32 %v643, %v318
  %v647 = vmul.f32 %v644, %v322
  %v648 = vmul.f32 %v645, %v326
  %649 = vst [vmem:[%s6] sm:$0xff] %v646
  %650 = vst [vmem:[%s6 + $0x8] sm:$0xff] %v647
  %651 = vst [vmem:[%s6 + $0x10] sm:$0xff] %v648
  // Predicated region
  $region26: #{res_block_forward.1} parent=0 // pred_check
    _
  $region27: #{res_block_forward.1} parent=0 // pred_check_branch
    %653 = sbr.rel (0) target = $region29
  $region28: #{res_block_forward.1} parent=0 // pred_region
    _
  $region29: #{res_block_forward.1} parent=0 // pred_fallthru
    _
  // Predicated region
  $region30: #{res_block_forward.1} parent=0 // pred_check
    _
  $region31: #{res_block_forward.1} parent=0 // pred_check_branch
    %655 = sbr.rel (0) target = $region33
  $region32: #{res_block_forward.1} parent=0 // pred_region
    _
  $region33: #{res_block_forward.1} parent=0 // pred_fallthru
    _

</llo_original>
